<compile_context>
chip_gen: v5e
topology: v5e:2x2
jax: 0.10.0
libtpu: 0.0.40
codegen_flags: <defaults>
</compile_context>

<pallas_src>
import functools
from typing import NamedTuple

import jax
import jax.numpy as jnp
from jax.experimental import pallas as pl
from jax.experimental.pallas import tpu as pltpu

_LANE = 128
_MIB = 1024 * 1024


def _round_up(x, m):
    return ((x + m - 1) // m) * m


def _cdiv(a, b):
    return -(-a // b)


def _sublane_multiple(dtype):
    # Packed-sublane multiple: 8 rows for 4-byte, 16 for 2-byte, 32 for 1-byte.
    return max(8, 32 // jnp.dtype(dtype).itemsize)


# ---------------------------------------------------------------------------
# Pallas kernel: out = l2_normalize(mat @ u, axis=-1), K-tiled, f32 accumulator
# ---------------------------------------------------------------------------
def _agg_norm_kernel(mat_ref, u_ref, o_ref, acc_ref, *, tk, u_resident):
    k = pl.program_id(1)

    @pl.when(k == 0)
    def _init():
        acc_ref[...] = jnp.zeros_like(acc_ref)

    if u_resident:
        # u is fully resident in VMEM (DMA'd once); slice the current K tile.
        start = pl.multiple_of(k * tk, tk)
        u_tile = u_ref[pl.ds(start, tk), :]
    else:
        u_tile = u_ref[...]

    acc_ref[...] += jnp.dot(mat_ref[...], u_tile,
                            preferred_element_type=jnp.float32)

    @pl.when(k == pl.num_programs(1) - 1)
    def _finalize():
        acc = acc_ref[...]
        # F.normalize(x, p=2, dim=1, eps=1e-12): x / max(||x||, eps).
        # 1/max(||x||, eps) == rsqrt(max(||x||^2, eps^2)) -> EUP rsqrt + VPU mul.
        norm_sq = jnp.sum(acc * acc, axis=-1, keepdims=True)
        inv = jax.lax.rsqrt(jnp.maximum(norm_sq, 1e-24))
        o_ref[...] = (acc * inv).astype(o_ref.dtype)


class _Plan(NamedTuple):
    tm: int
    tk: int
    Mp: int
    Kp: int
    Dp: int
    resident_u: bool
    vmem_limit_bytes: int


def _plan_tiles(M, K, D, mat_dtype, u_dtype, out_dtype,
                tm_max=1024, tk_max=1024,
                vmem_budget=40 * _MIB, vmem_cap=48 * _MIB):
    """Static tiling plan. Budgeted against v7x's 64 MiB/TC VMEM (the smallest
    of v5e/v6e/v7x) so the same plan is safe on all three generations."""
    mat_b = jnp.dtype(mat_dtype).itemsize
    u_b = jnp.dtype(u_dtype).itemsize
    out_b = jnp.dtype(out_dtype).itemsize
    sub_m = max(_sublane_multiple(mat_dtype), _sublane_multiple(out_dtype))

    Dp = _round_up(D, _LANE)

    # Balanced, 128-aligned contraction tiles.
    tk = _round_up(_cdiv(K, _cdiv(K, tk_max)), _LANE)
    Kp = _round_up(K, tk)

    # Balanced, packed-sublane-aligned row tiles; keep >= 2 row tiles so both
    # v7x TensorCores get work on the "parallel" axis.
    tm = _round_up(_cdiv(M, _cdiv(M, tm_max)), sub_m)
    if _cdiv(M, tm) < 2 and M > sub_m:
        tm = _round_up(_cdiv(M, 2), sub_m)
    tm = max(tm, sub_m)

    def vmem_use(tm_, tk_, kp_, resident):
        u_buf = 2 * kp_ * Dp * u_b if resident else 2 * tk_ * Dp * u_b
        return (2 * tm_ * tk_ * mat_b + u_buf
                + 2 * tm_ * Dp * out_b + tm_ * Dp * 4)

    # Shrink tiles if even the streamed configuration would blow the budget.
    while vmem_use(tm, tk, Kp, False) > vmem_budget and (tm > sub_m or tk > _LANE):
        if tm > sub_m:
            tm = max(sub_m, _round_up(tm // 2, sub_m))
        else:
            tk = max(_LANE, _round_up(tk // 2, _LANE))
            Kp = _round_up(K, tk)

    Mp = _round_up(M, tm)

    # Resident u only pays off when u would otherwise be re-streamed once per
    # row tile (multiple K tiles AND multiple row tiles) and it fits the budget.
    resident_u = (Kp // tk > 1 and Mp // tm > 1
                  and vmem_use(tm, tk, Kp, True) <= vmem_budget)

    use = vmem_use(tm, tk, Kp, resident_u)
    vmem_limit = int(min(vmem_cap, max(32 * _MIB, use + 8 * _MIB)))
    return _Plan(tm, tk, Mp, Kp, Dp, resident_u, vmem_limit)


def _agg_normalize_padded_impl(mat_p, u_p, *, tm, tk, resident_u,
                               vmem_limit_bytes, out_dtype):
    Mp, Kp = mat_p.shape
    Kp2, Dp = u_p.shape
    assert Kp == Kp2 and Mp % tm == 0 and Kp % tk == 0 and Dp % _LANE == 0

    kernel = functools.partial(_agg_norm_kernel, tk=tk, u_resident=resident_u)
    if resident_u:
        # Constant block index -> u is DMA'd once and stays resident in VMEM.
        u_spec = pl.BlockSpec((Kp, Dp), lambda i, k: (0, 0))
    else:
        u_spec = pl.BlockSpec((tk, Dp), lambda i, k: (k, 0))

    # TODO(synk): if profiling shows exposed DMA on the mat stream, add
    # pipeline_mode=pl.Buffered(3) to the mat BlockSpec below.
    return pl.pallas_call(
        kernel,
        out_shape=jax.ShapeDtypeStruct((Mp, Dp), out_dtype),
        grid=(Mp // tm, Kp // tk),
        in_specs=[
            pl.BlockSpec((tm, tk), lambda i, k: (i, k)),   # streamed mat tile
            u_spec,
        ],
        out_specs=pl.BlockSpec((tm, Dp), lambda i, k: (i, 0)),
        scratch_shapes=[pltpu.VMEM((tm, Dp), jnp.float32)],
        compiler_params=pltpu.CompilerParams(
            dimension_semantics=("parallel", "arbitrary"),
            vmem_limit_bytes=vmem_limit_bytes,
        ),
    )(mat_p, u_p)


_agg_normalize_padded = jax.jit(
    _agg_normalize_padded_impl,
    static_argnames=("tm", "tk", "resident_u", "vmem_limit_bytes", "out_dtype"))


@functools.partial(
    jax.jit,
    static_argnames=("tm", "tk", "resident_u", "vmem_limit_bytes", "out_dtype"))
def _gather_agg_normalize(mat_p, table_p, ids, w_rows, *, tm, tk, resident_u,
                          vmem_limit_bytes, out_dtype):
    # Fused (gather * relation-weight) feeding the Pallas matmul+normalize.
    # Tables / weights are already lane-dense (Dp) and indices are padded to
    # Kp, so no per-hop jnp.pad or cast is needed here.
    u = jnp.take(table_p, ids, axis=0) * w_rows
    return _agg_normalize_padded_impl(mat_p, u, tm=tm, tk=tk,
                                      resident_u=resident_u,
                                      vmem_limit_bytes=vmem_limit_bytes,
                                      out_dtype=out_dtype)


# ---------------------------------------------------------------------------
# Module wrapper (parameter init, one-time padding, hop loop)
# ---------------------------------------------------------------------------
class GraphConvPallas:
    def __init__(self, emb_dim, n_hops, nums, n_relations,
                 mess_dropout_rate=0.1, key=None, matmul_dtype=jnp.bfloat16):
        self.n_relations = n_relations
        self.n_hops = n_hops
        self.nums = nums
        self.n_items = nums[1]
        self.mess_dropout_rate = mess_dropout_rate
        # bf16 matmul inputs by default: halves HBM bytes of the dominant
        # streamed operands on this mem-bound kernel.  Accumulation and the
        # rsqrt epilogue stay f32 (safe on v5e's f32-only VPU/EUP).  Pass
        # matmul_dtype=None for the exact f32 path.
        self.matmul_dtype = matmul_dtype
        # xavier_uniform_(empty(n_relations - 1, emb_dim))
        if key is None:
            key = jax.random.PRNGKey(42)
        limit = (6.0 / (emb_dim + (n_relations - 1))) ** 0.5
        self.weight = jax.random.uniform(
            key, (n_relations - 1, emb_dim), jnp.float32, -limit, limit)
        # TODO(synk): int8 adjacency with per-row scales (the scale cancels
        # under L2 normalization) would give another ~2x on v5e/v6e; v7x's MXU
        # has no int support, so it is not enabled by default.

    def forward(self, entity_emb, item_emb, multi_hops, mess_dropout=True):
        kg_mat, ii_mat, kg_pairs = multi_hops[1], multi_hops[2], multi_hops[3]
        n_entities, D = entity_emb.shape
        n_items = item_emb.shape[0]
        P = kg_pairs.shape[0]
        cdt = self.matmul_dtype or jnp.float32   # matmul-input dtype
        odt = cdt                                 # kernel output dtype

        plan_kg = _plan_tiles(n_entities, P, D, cdt, cdt, odt)
        plan_ii = _plan_tiles(n_items, n_items, D, cdt, cdt, odt)
        Dp = plan_kg.Dp

        # ---- one-time padding / casting (hoisted out of the hop loop) ------
        kg_mat_p = jnp.pad(kg_mat.astype(cdt),
                           ((0, plan_kg.Mp - n_entities), (0, plan_kg.Kp - P)))
        ii_mat_p = jnp.pad(ii_mat.astype(cdt),
                           ((0, plan_ii.Mp - n_items), (0, plan_ii.Kp - n_items)))
        # Embedding tables / relation weights in a permanent lane-dense (Dp)
        # layout; entity table row-padded to Mp so every hop reuses one jit.
        ent_p = jnp.pad(entity_emb.astype(cdt),
                        ((0, plan_kg.Mp - n_entities), (0, Dp - D)))
        item_p = jnp.pad(item_emb.astype(cdt),
                         ((0, plan_ii.Kp - n_items), (0, Dp - D)))
        w_p = jnp.pad(self.weight.astype(cdt), ((0, 0), (0, Dp - D)))

        # Hop-invariant gather indices / relation weights, padded to Kp once.
        # Padded rows gather row 0 but carry a zero weight row -> contribute 0.
        # NOTE: jnp.take clips kg_pairs[:,0]-1 == -1 to 0 (PyTorch would wrap);
        # harmless because relation ids are >= 1 in the original usage.
        ent_ids = jnp.pad(kg_pairs[:, 1], (0, plan_kg.Kp - P))
        w_rows = jnp.pad(jnp.take(w_p, kg_pairs[:, 0] - 1, axis=0),
                         ((0, plan_kg.Kp - P), (0, 0)))

        entity_emb_multi = [entity_emb]
        item_emb_multi = [item_emb]

        # ii aggregation is hop-invariant (item_emb is never updated in the
        # reference forward) -> compute once, append n_hops times.
        item_agg = _agg_normalize_padded(
            ii_mat_p, item_p, tm=plan_ii.tm, tk=plan_ii.tk,
            resident_u=plan_ii.resident_u,
            vmem_limit_bytes=plan_ii.vmem_limit_bytes, out_dtype=odt,
        )[:n_items, :D].astype(item_emb.dtype)

        # TODO(synk): self.dropout exists in the reference __init__ but is
        # never applied in its forward(), so mess_dropout is a no-op here too.
        # TODO(synk): for very large pair counts, fold the gather + weight
        # multiply into the kernel (PrefetchScalarGridSpec row indices in SMEM,
        # gathered at tk-row granularity) instead of the wrapper-level jnp.take.
        for _ in range(self.n_hops):
            ent_p = _gather_agg_normalize(
                kg_mat_p, ent_p, ent_ids, w_rows,
                tm=plan_kg.tm, tk=plan_kg.tk, resident_u=plan_kg.resident_u,
                vmem_limit_bytes=plan_kg.vmem_limit_bytes, out_dtype=odt)
            entity_emb_multi.append(
                ent_p[:n_entities, :D].astype(entity_emb.dtype))
            item_emb_multi.append(item_agg)
        return entity_emb_multi, item_emb_multi


# ---------------------------------------------------------------------------
# Pure-JAX reference for the correctness check
# ---------------------------------------------------------------------------
def _l2n(x):
    n = jnp.sqrt(jnp.sum(x * x, axis=-1, keepdims=True))
    return x / jnp.maximum(n, 1e-12)


def _ref_forward(weight, entity_emb, item_emb, kg_mat, ii_mat, kg_pairs, n_hops):
    ents, items = [entity_emb], [item_emb]
    item_agg = _l2n(ii_mat @ item_emb)   # hop-invariant in the reference
    for _ in range(n_hops):
        u = entity_emb[kg_pairs[:, 1]] * weight[kg_pairs[:, 0] - 1]
        entity_emb = _l2n(kg_mat @ u)
        ents.append(entity_emb)
        items.append(item_agg)
    return ents, items


if __name__ == "__main__":
    emb_dim = 48          # not a multiple of 128 -> exercises lane padding
    n_entities = 72       # not a multiple of 128 -> exercises row/K padding
    n_items = 40
    n_pairs = 96
    n_relations = 4
    n_hops = 2
    nums = [8, n_items]

    key = jax.random.PRNGKey(0)
    k1, k2, k3, k4, k5, k6 = jax.random.split(key, 6)

    entity_emb = jax.random.normal(k1, (n_entities, emb_dim), jnp.float32)
    item_emb = jax.random.normal(k2, (n_items, emb_dim), jnp.float32)
    kg_mat = jax.random.uniform(k3, (n_entities, n_pairs), jnp.float32)
    ii_mat = jax.random.uniform(k4, (n_items, n_items), jnp.float32)
    rel_ids = jax.random.randint(k5, (n_pairs,), 1, n_relations)   # 1..n_relations-1
    ent_ids = jax.random.randint(k6, (n_pairs,), 0, n_entities)
    kg_pairs = jnp.stack([rel_ids, ent_ids], axis=1)

    multi_hops = (None, kg_mat, ii_mat, kg_pairs)

    # --- direct kernel-path checks: streamed u and resident u ---------------
    km1, km2 = jax.random.split(jax.random.PRNGKey(7))
    mat_t = jax.random.normal(km1, (128, 256), jnp.float32)
    u_t = jax.random.normal(km2, (256, 128), jnp.float32)
    ref_t = _l2n(mat_t @ u_t)
    for res in (False, True):
        got_t = _agg_normalize_padded(mat_t, u_t, tm=64, tk=128, resident_u=res,
                                      vmem_limit_bytes=32 * _MIB,
                                      out_dtype=jnp.float32)
        jax.block_until_ready(got_t)
        assert jnp.allclose(got_t, ref_t, atol=1e-4, rtol=1e-4), res

    ref_ents, ref_items = None, None

    # --- f32 path (exact check against the pure-JAX reference) --------------
    model = GraphConvPallas(emb_dim, n_hops, nums, n_relations,
                            key=jax.random.PRNGKey(123), matmul_dtype=None)
    ent_list, item_list = model.forward(entity_emb, item_emb, multi_hops)
    jax.block_until_ready(ent_list[-1])
    jax.block_until_ready(item_list[-1])

    ref_ents, ref_items = _ref_forward(model.weight, entity_emb, item_emb,
                                       kg_mat, ii_mat, kg_pairs, n_hops)
    for a, b in zip(ent_list, ref_ents):
        assert a.shape == b.shape
        assert jnp.allclose(a, b, atol=3e-5, rtol=3e-5)
    for a, b in zip(item_list, ref_items):
        assert a.shape == b.shape
        assert jnp.allclose(a, b, atol=3e-5, rtol=3e-5)

    # --- default bf16 matmul-input path (mem-bound config; loose tolerance) -
    model_bf16 = GraphConvPallas(emb_dim, n_hops, nums, n_relations,
                                 key=jax.random.PRNGKey(123))
    ent_bf16, item_bf16 = model_bf16.forward(entity_emb, item_emb, multi_hops)
    jax.block_until_ready(ent_bf16[-1])
    jax.block_until_ready(item_bf16[-1])
    for a, b in zip(ent_bf16, ref_ents):
        assert a.shape == b.shape
        assert jnp.allclose(a, b, atol=5e-2, rtol=5e-2)
    for a, b in zip(item_bf16, ref_items):
        assert a.shape == b.shape
        assert jnp.allclose(a, b, atol=5e-2, rtol=5e-2)

    print("KERNEL_OK")
</pallas_src>

<mosaic_0001>
module attributes {stable_mosaic.version = 11 : i64} {
  func.func @_agg_norm_kernel(%arg0: i32, %arg1: i32, %arg2: memref<64x128xf32, #tpu.memory_space<vmem>>, %arg3: memref<128x128xf32, #tpu.memory_space<vmem>>, %arg4: memref<64x128xf32, #tpu.memory_space<vmem>>, %arg5: memref<64x128xf32, #tpu.memory_space<vmem>>) attributes {dimension_semantics = [#tpu.dimension_semantics<parallel>, #tpu.dimension_semantics<arbitrary>], iteration_bounds = array<i64: 2, 2>, scalar_prefetch = 0 : i64, scratch_operands = 1 : i64, tpu.core_type = #tpu.core_type<tc>, window_params = [{transform_indices = @transform_0, window_bounds = array<i64: 64, 128>}, {transform_indices = @transform_1, window_bounds = array<i64: 128, 128>}, {transform_indices = @transform_2, window_bounds = array<i64: 64, 128>}]} {
    %c0_i32 = arith.constant 0 : i32
    %0 = arith.cmpi eq, %arg1, %c0_i32 : i32
    %1 = arith.extui %0 : i1 to i32
    %c0_i32_0 = arith.constant 0 : i32
    %2 = arith.cmpi ne, %1, %c0_i32_0 : i32
    scf.if %2 {
      %cst_9 = arith.constant 0.000000e+00 : f32
      %12 = vector.broadcast %cst_9 : f32 to vector<64x128xf32>
      %c0_10 = arith.constant 0 : index
      %c0_11 = arith.constant 0 : index
      %13 = vector.load %arg5[%c0_10, %c0_11] : memref<64x128xf32, #tpu.memory_space<vmem>>, vector<64x128xf32>
      tpu.vector_store %arg5[%c0_10, %c0_11], %12 {strides = array<i32>} : memref<64x128xf32, #tpu.memory_space<vmem>>, vector<64x128xf32>,
    } else {
    }
    %c0 = arith.constant 0 : index
    %c0_1 = arith.constant 0 : index
    %3 = vector.load %arg3[%c0, %c0_1] : memref<128x128xf32, #tpu.memory_space<vmem>>, vector<128x128xf32>
    %c0_2 = arith.constant 0 : index
    %c0_3 = arith.constant 0 : index
    %4 = vector.load %arg5[%c0_2, %c0_3] : memref<64x128xf32, #tpu.memory_space<vmem>>, vector<64x128xf32>
    %c0_4 = arith.constant 0 : index
    %c0_5 = arith.constant 0 : index
    %5 = vector.load %arg2[%c0_4, %c0_5] : memref<64x128xf32, #tpu.memory_space<vmem>>, vector<64x128xf32>
    %cst = arith.constant dense<0.000000e+00> : vector<64x128xf32>
    %6 = tpu.matmul %5, %3, %cst {dimension_numbers = #tpu.dot_dimension_numbers<[1], [0], [0], [1], [0, 0, 1, 1], [], []>} : vector<64x128xf32>, vector<128x128xf32>, vector<64x128xf32> -> vector<64x128xf32>
    %7 = arith.addf %4, %6 : vector<64x128xf32>
    %c0_6 = arith.constant 0 : index
    %c0_7 = arith.constant 0 : index
    %8 = vector.load %arg5[%c0_6, %c0_7] : memref<64x128xf32, #tpu.memory_space<vmem>>, vector<64x128xf32>
    tpu.vector_store %arg5[%c0_6, %c0_7], %7 {strides = array<i32>} : memref<64x128xf32, #tpu.memory_space<vmem>>, vector<64x128xf32>,
    %c1_i32 = arith.constant 1 : i32
    %9 = arith.cmpi eq, %arg1, %c1_i32 : i32
    %10 = arith.extui %9 : i1 to i32
    %c0_i32_8 = arith.constant 0 : i32
    %11 = arith.cmpi ne, %10, %c0_i32_8 : i32
    scf.if %11 {
      %c0_9 = arith.constant 0 : index
      %c0_10 = arith.constant 0 : index
      %12 = vector.load %arg5[%c0_9, %c0_10] : memref<64x128xf32, #tpu.memory_space<vmem>>, vector<64x128xf32>
      %13 = arith.mulf %12, %12 : vector<64x128xf32>
      %cst_11 = arith.constant dense<0.000000e+00> : vector<64xf32>
      %14 = vector.multi_reduction <add>, %13, %cst_11 [1] : vector<64x128xf32> to vector<64xf32>
      %15 = vector.shape_cast %14 : vector<64xf32> to vector<64x1xf32>
      %cst_12 = arith.constant 1.000000e-24 : f32
      %16 = vector.broadcast %cst_12 : f32 to vector<64x1xf32>
      %17 = arith.maximumf %15, %16 : vector<64x1xf32>
      %18 = math.rsqrt %17 : vector<64x1xf32>
      %19 = vector.broadcast %18 : vector<64x1xf32> to vector<64x128xf32>
      %20 = arith.mulf %12, %19 : vector<64x128xf32>
      %c0_13 = arith.constant 0 : index
      %c0_14 = arith.constant 0 : index
      %21 = vector.load %arg4[%c0_13, %c0_14] : memref<64x128xf32, #tpu.memory_space<vmem>>, vector<64x128xf32>
      tpu.vector_store %arg4[%c0_13, %c0_14], %20 {strides = array<i32>} : memref<64x128xf32, #tpu.memory_space<vmem>>, vector<64x128xf32>,
    } else {
    }
    return
  }
  func.func @transform_0(%arg0: i32, %arg1: i32) -> (i32, i32) {
    %c0_i32 = arith.constant 0 : i32
    return %arg0, %arg1 : i32, i32
  }
  func.func @transform_1(%arg0: i32, %arg1: i32) -> (i32, i32) {
    %c0_i32 = arith.constant 0 : i32
    %c0_i32_0 = arith.constant 0 : i32
    return %arg1, %c0_i32 : i32, i32
  }
  func.func @transform_2(%arg0: i32, %arg1: i32) -> (i32, i32) {
    %c0_i32 = arith.constant 0 : i32
    %c0_i32_0 = arith.constant 0 : i32
    return %arg0, %c0_i32 : i32, i32
  }
}

</mosaic_0001>

<llo_original>
// kernel: _agg_normalize_padded_impl.1
$region0: #{_agg_normalize_padded_impl.1}
  #allocation0 [shape = 'u32[]', space=smem, size = 0x4, offset = 0x4, fixed_abs, tag = 'smem constant byte address 0x4 - core index']
  #allocation1 [shape = 'u32[72,128]{1,0:T(1,128)}', space=vmem, size = 0x9000, scoped, tag = 'internal scratch']
  #allocation2 [shape = 'f32[64,128]{1,0:T(8,128)}', space=vmem, size = 0x8000, scoped, tag = 'scratch operand']
  %s0 = inlined_call_operand.hbm [shape: f32[128,256], index: 0, kind: input, shape index: {}]
  %s1 = inlined_call_operand.hbm [shape: f32[256,128], index: 1, kind: input, shape index: {}]
  %s2 = inlined_call_operand.hbm [shape: f32[128,128], index: 2, kind: output, shape index: {}]
  %s3 = sld [smem:[#allocation0]]
  $region57: #{_agg_normalize_padded_impl.1} parent=0
    _
  %s5 = ssub.s32 1, %s3
  %s6 = scalar_select 0, %s5, %s3
  $region1: #{_agg_normalize_padded_impl.1} parent=0
    #allocation3 [shape = 'u8[65536]{0}', space=vmem, size = 0x10000, scoped, tag = 'input window, operand 0']
    #allocation4 [shape = 's32[2]{0}', space=sflag, size = 0x8, scoped, tag = 'scoped memory for _agg_normalize_padded_impl.1']
    #allocation5 [shape = 's32[2]{0}', space=sflag, size = 0x8, scoped, tag = 'scoped memory for _agg_normalize_padded_impl.1']
    #allocation6 [shape = 'u8[131072]{0}', space=vmem, size = 0x20000, scoped, tag = 'input window, operand 1']
    #allocation7 [shape = 's32[2]{0}', space=sflag, size = 0x8, scoped, tag = 'scoped memory for _agg_normalize_padded_impl.1']
    #allocation8 [shape = 'u8[65536]{0}', space=vmem, size = 0x10000, scoped, tag = 'output window, operand 0']
    %7 = vsyncpa [#allocation4], 0
    %s8 = scalar_lea.sflag [#allocation4], 1
    %9 = vsyncpa %s8, 0
    %10 = vsyncpa [#allocation7], 0
    %s11 = scalar_lea.sflag [#allocation7], 1
    %12 = vsyncpa %s11, 0
    %13 = vsyncpa [#allocation5], 0
    %s14 = scalar_lea.sflag [#allocation5], 1
    %15 = vsyncpa %s14, 0
    loop: start=0, step=1, limit=6
    $region2: #{_agg_normalize_padded_impl.1} parent=1 // loop_pre_header
      _
    $region3: #{_agg_normalize_padded_impl.1} parent=1 // loop_header
      %s17 = sphi 0, %s21
      %p18 = scmp.ge.s32.totalorder %s17, 6
      %s24 = sphi 0, %s36
      %s25 = sphi 0, %s32
      %s26 = sphi 0, %s24
      %s27 = sphi 0, %s25
      %s28 = sphi 0, %s26
      %s29 = sphi 0, %s27
      %s41 = sphi 0, %s43
      %s44 = sphi 0, %s41
      %s45 = sphi 0, %s44
      %s61 = sphi 0, %s45
      %s67 = sphi 0, %s69
      %s70 = sphi 0, %s67
      %s71 = sphi 0, %s70
      %s87 = sphi 0, %s71
      %s93 = sphi 0, %s95
      %s96 = sphi 0, %s93
      %s97 = sphi 0, %s96
      %s113 = sphi 0, %s97
    $region4: #{_agg_normalize_padded_impl.1} parent=1 // loop_header_branch
      %20 = sbr.rel (%p18) target = $region8
    $region5: #{_agg_normalize_padded_impl.1} parent=1 // loop_body
      %s22 = ssub.s32 %s17, 1
      %s23 = ssub.s32 %s17, 2
      %s30 = sadd.s32 1, %s25
      %p31 = scmp.ge.s32.totalorder %s30, 2
      %s32 = scalar_select %p31, 0, %s30
      %s33 = sadd.s32 1, %s24
      %s34 = scalar_select %p31, %s33, %s24
      %p35 = scmp.ge.s32.totalorder %s34, 2
      %s36 = scalar_select %p35, 0, %s34
      %s37 = ssub.s32 %s24, %s36
      %s38 = ssub.s32 %s25, %s32
      %s39 = sor.u32 %s37, %s38
      %p40 = scmp.eq.s32.totalorder %s39, 0
      %s42 = sadd.s32 %s41, 1
      %s43 = scalar_select %p40, %s41, %s42
      %p46 = pneg %p40
      %p47 = scmp.eq.s32.totalorder %s17, 3
      %p48 = por %p46, %p47
      %p49 = scmp.ne.s32.totalorder %s41, %s44
      %p50 = scmp.eq.s32.totalorder %s17, 0
      %p51 = por %p49, %p50
      %p52 = scmp.ne.s32.totalorder %s41, %s44
      %p53 = scmp.eq.s32.totalorder %s22, 3
      %p54 = por %p52, %p53
      %p55 = scmp.ne.s32.totalorder %s44, %s45
      %p56 = scmp.eq.s32.totalorder %s22, 0
      %p57 = por %p55, %p56
      %p58 = scmp.ne.s32.totalorder %s44, %s45
      %p59 = scmp.eq.s32.totalorder %s23, 3
      %p60 = por %p58, %p59
      %p62 = scmp.ne.s32.totalorder %s45, %s61
      %p63 = scmp.eq.s32.totalorder %s23, 0
      %p64 = por %p62, %p63
      %s65 = ssub.s32 %s25, %s32
      %p66 = scmp.eq.s32.totalorder %s65, 0
      %s68 = sadd.s32 %s67, 1
      %s69 = scalar_select %p66, %s67, %s68
      %p72 = pneg %p66
      %p73 = scmp.eq.s32.totalorder %s17, 3
      %p74 = por %p72, %p73
      %p75 = scmp.ne.s32.totalorder %s67, %s70
      %p76 = scmp.eq.s32.totalorder %s17, 0
      %p77 = por %p75, %p76
      %p78 = scmp.ne.s32.totalorder %s67, %s70
      %p79 = scmp.eq.s32.totalorder %s22, 3
      %p80 = por %p78, %p79
      %p81 = scmp.ne.s32.totalorder %s70, %s71
      %p82 = scmp.eq.s32.totalorder %s22, 0
      %p83 = por %p81, %p82
      %p84 = scmp.ne.s32.totalorder %s70, %s71
      %p85 = scmp.eq.s32.totalorder %s23, 3
      %p86 = por %p84, %p85
      %p88 = scmp.ne.s32.totalorder %s71, %s87
      %p89 = scmp.eq.s32.totalorder %s23, 0
      %p90 = por %p88, %p89
      %s91 = ssub.s32 %s24, %s36
      %p92 = scmp.eq.s32.totalorder %s91, 0
      %s94 = sadd.s32 %s93, 1
      %s95 = scalar_select %p92, %s93, %s94
      %p98 = pneg %p92
      %p99 = scmp.eq.s32.totalorder %s17, 3
      %p100 = por %p98, %p99
      %p101 = scmp.ne.s32.totalorder %s93, %s96
      %p102 = scmp.eq.s32.totalorder %s17, 0
      %p103 = por %p101, %p102
      %p104 = scmp.ne.s32.totalorder %s93, %s96
      %p105 = scmp.eq.s32.totalorder %s22, 3
      %p106 = por %p104, %p105
      %p107 = scmp.ne.s32.totalorder %s96, %s97
      %p108 = scmp.eq.s32.totalorder %s22, 0
      %p109 = por %p107, %p108
      %p110 = scmp.ne.s32.totalorder %s96, %s97
      %p111 = scmp.eq.s32.totalorder %s23, 3
      %p112 = por %p110, %p111
      %p114 = scmp.ne.s32.totalorder %s97, %s113
      %p115 = scmp.eq.s32.totalorder %s23, 0
      %p116 = por %p114, %p115
      %p117 = scmp.le.s32.totalorder 1, %s17
      %p118 = scmp.lt.s32.totalorder %s17, 5
      %p119 = pnand %p117, %p118
      %p120 = pneg %p119
      // Predicated region
      $region9: #{_agg_normalize_padded_impl.1} parent=5 // pred_check
        _
      $region10: #{_agg_normalize_padded_impl.1} parent=5 // pred_check_branch
        %122 = sbr.rel (%p119) target = $region12
      $region11: #{_agg_normalize_padded_impl.1} parent=5 // pred_region
        %s123 = ssub.s32 %s17, 1
      $region12: #{_agg_normalize_padded_impl.1} parent=5 // pred_fallthru
        _
      %p124 = scmp.lt.s32.totalorder %s17, 4
      // Predicated region
      $region13: #{_agg_normalize_padded_impl.1} parent=5 // pred_check
        %p125 = pneg %p124
      $region14: #{_agg_normalize_padded_impl.1} parent=5 // pred_check_branch
        %127 = sbr.rel (%p125) target = $region16
      $region15: #{_agg_normalize_padded_impl.1} parent=5 // pred_region
        // Predicated region
        $region17: #{_agg_normalize_padded_impl.1} parent=15 // pred_check
          %p128 = pneg %p51
        $region18: #{_agg_normalize_padded_impl.1} parent=15 // pred_check_branch
          %130 = sbr.rel (%p128) target = $region20
        $region19: #{_agg_normalize_padded_impl.1} parent=15 // pred_region
          %s131 = sand.u32 %s41, 1
          %s132 = scalar_lea.sflag [#allocation4], %s131
          %s133 = sand.u32 %s41, 1
          %s134 = smul.addr %s133, 64
          %s135 = scalar_lea.vmem [#allocation3], %s134
          %s136 = smul.u32 8, %s24
          %138 = vsyncadd %s132, 0
          %s139 = smul.addr %s136, 2
          %s140 = sadd.s32 %s25, %s139
          %s141 = smul.addr %s140, 8
          %s142 = scalar_lea.hbm %s0, %s141
          %s143 = sshll.u32 %s142, 4
          %s144 = int_to_ptr.hbm [resolvable:$true] %s143
          %s145 = sshll.u32 %s135, 4
          %s146 = int_to_ptr.vmem [resolvable:$true] %s145
          %151 = dma.hbm_to_vmem [thread:$0]  %s144, 1024, %s146, %s132, 256, 128, 8
        $region20: #{_agg_normalize_padded_impl.1} parent=15 // pred_fallthru
          _
        // Predicated region
        $region21: #{_agg_normalize_padded_impl.1} parent=15 // pred_check
          %p152 = pneg %p77
        $region22: #{_agg_normalize_padded_impl.1} parent=15 // pred_check_branch
          %154 = sbr.rel (%p152) target = $region24
        $region23: #{_agg_normalize_padded_impl.1} parent=15 // pred_region
          %s155 = sand.u32 %s67, 1
          %s156 = scalar_lea.sflag [#allocation7], %s155
          %s157 = sand.u32 %s67, 1
          %s158 = smul.addr %s157, 128
          %s159 = scalar_lea.vmem [#allocation6], %s158
          %s160 = smul.u32 16, %s25
          %162 = vsyncadd %s156, 0
          %s163 = smul.addr %s160, 8
          %s164 = scalar_lea.hbm %s1, %s163
          %s165 = sshll.u32 %s164, 4
          %s166 = int_to_ptr.hbm [resolvable:$true] %s165
          %s167 = sshll.u32 %s159, 4
          %s168 = int_to_ptr.vmem [resolvable:$true] %s167
          %173 = dma.hbm_to_vmem [thread:$0]  %s166, 2048, %s168, %s156, 128, 128, 8
        $region24: #{_agg_normalize_padded_impl.1} parent=15 // pred_fallthru
          _
      $region16: #{_agg_normalize_padded_impl.1} parent=5 // pred_fallthru
        _
      %p174 = scmp.le.s32.totalorder 1, %s17
      %p175 = scmp.lt.s32.totalorder %s17, 5
      %p176 = pnand %p174, %p175
      %p177 = pneg %p176
      // Predicated region
      $region25: #{_agg_normalize_padded_impl.1} parent=5 // pred_check
        _
      $region26: #{_agg_normalize_padded_impl.1} parent=5 // pred_check_branch
        %179 = sbr.rel (%p176) target = $region28
      $region27: #{_agg_normalize_padded_impl.1} parent=5 // pred_region
        %s180 = ssub.s32 %s17, 1
        %s181 = sand.u32 %s44, 1
        %s182 = scalar_lea.sflag [#allocation4], %s181
        %s183 = sand.u32 %s44, 1
        %s184 = smul.addr %s183, 64
        %s185 = scalar_lea.vmem [#allocation3], %s184
        // Predicated region
        $region29: #{_agg_normalize_padded_impl.1} parent=27 // pred_check
          %p186 = pneg %p57
        $region30: #{_agg_normalize_padded_impl.1} parent=27 // pred_check_branch
          %188 = sbr.rel (%p186) target = $region32
        $region31: #{_agg_normalize_padded_impl.1} parent=27 // pred_region
          %190 = dma.done %s182, 1024
        $region32: #{_agg_normalize_padded_impl.1} parent=27 // pred_fallthru
          _
        %s191 = sand.u32 %s70, 1
        %s192 = scalar_lea.sflag [#allocation7], %s191
        %s193 = sand.u32 %s70, 1
        %s194 = smul.addr %s193, 128
        %s195 = scalar_lea.vmem [#allocation6], %s194
        // Predicated region
        $region33: #{_agg_normalize_padded_impl.1} parent=27 // pred_check
          %p196 = pneg %p83
        $region34: #{_agg_normalize_padded_impl.1} parent=27 // pred_check_branch
          %198 = sbr.rel (%p196) target = $region36
        $region35: #{_agg_normalize_padded_impl.1} parent=27 // pred_region
          %200 = dma.done %s192, 2048
        $region36: #{_agg_normalize_padded_impl.1} parent=27 // pred_fallthru
          _
        %s201 = sand.u32 %s44, 1
        %s202 = scalar_lea.sflag [#allocation4], %s201
        %s203 = sand.u32 %s44, 1
        %s204 = smul.addr %s203, 64
        %s205 = scalar_lea.vmem [#allocation3], %s204
        %p206 = pneg %p57
        %p207 = pneg %p54
        %s208 = sand.u32 %s70, 1
        %s209 = scalar_lea.sflag [#allocation7], %s208
        %s210 = sand.u32 %s70, 1
        %s211 = smul.addr %s210, 128
        %s212 = scalar_lea.vmem [#allocation6], %s211
        %p213 = pneg %p83
        %p214 = pneg %p80
        %p215 = pneg %p109
        %p216 = pneg %p106
        %s217 = sand.u32 %s96, 1
        %s218 = scalar_lea.sflag [#allocation5], %s217
        %s219 = sand.u32 %s96, 1
        %s220 = smul.addr %s219, 64
        %s221 = scalar_lea.vmem [#allocation8], %s220
        %s222 = smul.u32 8, %s26
        %s223 = smul.u32 16, %s27
        %s224 = smul.u32 8, %s26
        %p225 = scmp.eq.s32.totalorder %s27, 0
        // Predicated region
        $region37: #{_agg_normalize_padded_impl.1} parent=27 // pred_check
          %p226 = pneg %p225
        $region38: #{_agg_normalize_padded_impl.1} parent=27 // pred_check_branch
          %228 = sbr.rel (%p226) target = $region40
        $region39: #{_agg_normalize_padded_impl.1} parent=27 // pred_region
          %229 = vst [vmem:[#allocation2] sm:$0xff] 0.0
          %230 = vst [vmem:[#allocation2 + $0x8] sm:$0xff] 0.0
          %231 = vst [vmem:[#allocation2 + $0x10] sm:$0xff] 0.0
          %232 = vst [vmem:[#allocation2 + $0x18] sm:$0xff] 0.0
          %233 = vst [vmem:[#allocation2 + $0x20] sm:$0xff] 0.0
          %234 = vst [vmem:[#allocation2 + $0x28] sm:$0xff] 0.0
          %235 = vst [vmem:[#allocation2 + $0x30] sm:$0xff] 0.0
          %236 = vst [vmem:[#allocation2 + $0x38] sm:$0xff] 0.0
        $region40: #{_agg_normalize_padded_impl.1} parent=27 // pred_fallthru
          _
        %v237 = vld [vmem:[%s195] sm:$0xff]
        %v238 = vld [vmem:[%s195 + $0x8] sm:$0xff]
        %v239 = vld [vmem:[%s195 + $0x10] sm:$0xff]
        %v240 = vld [vmem:[%s195 + $0x18] sm:$0xff]
        %v241 = vld [vmem:[%s195 + $0x20] sm:$0xff]
        %v242 = vld [vmem:[%s195 + $0x28] sm:$0xff]
        %v243 = vld [vmem:[%s195 + $0x30] sm:$0xff]
        %v244 = vld [vmem:[%s195 + $0x38] sm:$0xff]
        %v245 = vld [vmem:[%s195 + $0x40] sm:$0xff]
        %v246 = vld [vmem:[%s195 + $0x48] sm:$0xff]
        %v247 = vld [vmem:[%s195 + $0x50] sm:$0xff]
        %v248 = vld [vmem:[%s195 + $0x58] sm:$0xff]
        %v249 = vld [vmem:[%s195 + $0x60] sm:$0xff]
        %v250 = vld [vmem:[%s195 + $0x68] sm:$0xff]
        %v251 = vld [vmem:[%s195 + $0x70] sm:$0xff]
        %v252 = vld [vmem:[%s195 + $0x78] sm:$0xff]
        %v253 = vld [vmem:[#allocation2] sm:$0xff]
        %v254 = vld [vmem:[#allocation2 + $0x8] sm:$0xff]
        %v255 = vld [vmem:[#allocation2 + $0x10] sm:$0xff]
        %v256 = vld [vmem:[#allocation2 + $0x18] sm:$0xff]
        %v257 = vld [vmem:[#allocation2 + $0x20] sm:$0xff]
        %v258 = vld [vmem:[#allocation2 + $0x28] sm:$0xff]
        %v259 = vld [vmem:[#allocation2 + $0x30] sm:$0xff]
        %v260 = vld [vmem:[#allocation2 + $0x38] sm:$0xff]
        %v261 = vld [vmem:[%s185] sm:$0xff]
        %v262 = vld [vmem:[%s185 + $0x8] sm:$0xff]
        %v263 = vld [vmem:[%s185 + $0x10] sm:$0xff]
        %v264 = vld [vmem:[%s185 + $0x18] sm:$0xff]
        %v265 = vld [vmem:[%s185 + $0x20] sm:$0xff]
        %v266 = vld [vmem:[%s185 + $0x28] sm:$0xff]
        %v267 = vld [vmem:[%s185 + $0x30] sm:$0xff]
        %v268 = vld [vmem:[%s185 + $0x38] sm:$0xff]
        %269 = vmatpush.msra.mxu0 %v252
        %270 = vmatpush.msra.mxu0 %v251
        %271 = vmatpush.msra.mxu0 %v250
        %272 = vmatpush.msra.mxu0 %v249
        %273 = vmatpush.msra.mxu0 %v248
        %274 = vmatpush.msra.mxu0 %v247
        %275 = vmatpush.msra.mxu0 %v246
        %276 = vmatpush.msra.mxu0 %v245
        %277 = vmatpush.msra.mxu0 %v244
        %278 = vmatpush.msra.mxu0 %v243
        %279 = vmatpush.msra.mxu0 %v242
        %280 = vmatpush.msra.mxu0 %v241
        %281 = vmatpush.msra.mxu0 %v240
        %282 = vmatpush.msra.mxu0 %v239
        %283 = vmatpush.msra.mxu0 %v238
        %284 = vmatpush.msra.mxu0 %v237
        %285 = vmatmul.f32.gmra.mxu0 %v261
        %v286 = vpop.f32.mrf.mxu0
        %v287 = vadd.f32 0.0, %v286
        %288 = vmatmul.f32.gmra.mxu0 %v262
        %v289 = vpop.f32.mrf.mxu0
        %v290 = vadd.f32 0.0, %v289
        %291 = vmatmul.f32.gmra.mxu0 %v263
        %v292 = vpop.f32.mrf.mxu0
        %v293 = vadd.f32 0.0, %v292
        %294 = vmatmul.f32.gmra.mxu0 %v264
        %v295 = vpop.f32.mrf.mxu0
        %v296 = vadd.f32 0.0, %v295
        %297 = vmatmul.f32.gmra.mxu0 %v265
        %v298 = vpop.f32.mrf.mxu0
        %v299 = vadd.f32 0.0, %v298
        %300 = vmatmul.f32.gmra.mxu0 %v266
        %v301 = vpop.f32.mrf.mxu0
        %v302 = vadd.f32 0.0, %v301
        %303 = vmatmul.f32.gmra.mxu0 %v267
        %v304 = vpop.f32.mrf.mxu0
        %v305 = vadd.f32 0.0, %v304
        %306 = vmatmul.f32.gmra.mxu0 %v268
        %v307 = vpop.f32.mrf.mxu0
        %v308 = vadd.f32 0.0, %v307
        %309 = vdwg.mxu0
        %v310 = vadd.f32 %v253, %v287
        %v311 = vadd.f32 %v254, %v290
        %v312 = vadd.f32 %v255, %v293
        %v313 = vadd.f32 %v256, %v296
        %v314 = vadd.f32 %v257, %v299
        %v315 = vadd.f32 %v258, %v302
        %v316 = vadd.f32 %v259, %v305
        %v317 = vadd.f32 %v260, %v308
        %318 = vst [vmem:[#allocation2] sm:$0xff] %v310
        %319 = vst [vmem:[#allocation2 + $0x8] sm:$0xff] %v311
        %320 = vst [vmem:[#allocation2 + $0x10] sm:$0xff] %v312
        %321 = vst [vmem:[#allocation2 + $0x18] sm:$0xff] %v313
        %322 = vst [vmem:[#allocation2 + $0x20] sm:$0xff] %v314
        %323 = vst [vmem:[#allocation2 + $0x28] sm:$0xff] %v315
        %324 = vst [vmem:[#allocation2 + $0x30] sm:$0xff] %v316
        %325 = vst [vmem:[#allocation2 + $0x38] sm:$0xff] %v317
        %p326 = scmp.eq.s32.totalorder %s27, 1
        // Predicated region
        $region41: #{_agg_normalize_padded_impl.1} parent=27 // pred_check
          %p327 = pneg %p326
        $region42: #{_agg_normalize_padded_impl.1} parent=27 // pred_check_branch
          %329 = sbr.rel (%p327) target = $region44
        $region43: #{_agg_normalize_padded_impl.1} parent=27 // pred_region
          %v330 = vld [vmem:[#allocation2] sm:$0xff]
          %v331 = vld [vmem:[#allocation2 + $0x8] sm:$0xff]
          %v332 = vld [vmem:[#allocation2 + $0x10] sm:$0xff]
          %v333 = vld [vmem:[#allocation2 + $0x18] sm:$0xff]
          %v334 = vld [vmem:[#allocation2 + $0x20] sm:$0xff]
          %v335 = vld [vmem:[#allocation2 + $0x28] sm:$0xff]
          %v336 = vld [vmem:[#allocation2 + $0x30] sm:$0xff]
          %v337 = vld [vmem:[#allocation2 + $0x38] sm:$0xff]
          %v338 = vmul.f32 %v330, %v330
          %v339 = vmul.f32 %v331, %v331
          %v340 = vmul.f32 %v332, %v332
          %v341 = vmul.f32 %v333, %v333
          %v342 = vmul.f32 %v334, %v334
          %v343 = vmul.f32 %v335, %v335
          %v344 = vmul.f32 %v336, %v336
          %v345 = vmul.f32 %v337, %v337
          %346 = vadd.xlane.f32.xlu0 %v338
          %v347 = vpop.xlane.xlu0 %346
          %348 = vadd.xlane.f32.xlu0 %v339
          %v349 = vpop.xlane.xlu0 %348
          %350 = vadd.xlane.f32.xlu0 %v340
          %v351 = vpop.xlane.xlu0 %350
          %352 = vadd.xlane.f32.xlu0 %v341
          %v353 = vpop.xlane.xlu0 %352
          %354 = vadd.xlane.f32.xlu0 %v342
          %v355 = vpop.xlane.xlu0 %354
          %356 = vadd.xlane.f32.xlu0 %v343
          %v357 = vpop.xlane.xlu0 %356
          %358 = vadd.xlane.f32.xlu0 %v344
          %v359 = vpop.xlane.xlu0 %358
          %360 = vadd.xlane.f32.xlu0 %v345
          %v361 = vpop.xlane.xlu0 %360
          %v362 = vmax.f32 %v347, 1e-24
          %v363 = vmax.f32 %v349, 1e-24
          %v364 = vmax.f32 %v351, 1e-24
          %v365 = vmax.f32 %v353, 1e-24
          %v366 = vmax.f32 %v355, 1e-24
          %v367 = vmax.f32 %v357, 1e-24
          %v368 = vmax.f32 %v359, 1e-24
          %v369 = vmax.f32 %v361, 1e-24
          %v370 = vrsqrt.pop %v362
          %v371 = vmul.f32 %v370, %v362
          %v372 = vmul.f32 %v371, %v370
          %v373 = vmul.f32 0.5, %v372
          %v374 = vsub.f32 1.5, %v373
          %v375 = vmul.f32 %v370, %v374
          %vm376 = vweird.f32 %v362
          %vm377 = vweird.f32 %v370
          %vm378 = vmor %vm376, %vm377
          %v379 = vsel %vm378, %v370, %v375
          %v380 = vrsqrt.pop %v363
          %v381 = vmul.f32 %v380, %v363
          %v382 = vmul.f32 %v381, %v380
          %v383 = vmul.f32 0.5, %v382
          %v384 = vsub.f32 1.5, %v383
          %v385 = vmul.f32 %v380, %v384
          %vm386 = vweird.f32 %v363
          %vm387 = vweird.f32 %v380
          %vm388 = vmor %vm386, %vm387
          %v389 = vsel %vm388, %v380, %v385
          %v390 = vrsqrt.pop %v364
          %v391 = vmul.f32 %v390, %v364
          %v392 = vmul.f32 %v391, %v390
          %v393 = vmul.f32 0.5, %v392
          %v394 = vsub.f32 1.5, %v393
          %v395 = vmul.f32 %v390, %v394
          %vm396 = vweird.f32 %v364
          %vm397 = vweird.f32 %v390
          %vm398 = vmor %vm396, %vm397
          %v399 = vsel %vm398, %v390, %v395
          %v400 = vrsqrt.pop %v365
          %v401 = vmul.f32 %v400, %v365
          %v402 = vmul.f32 %v401, %v400
          %v403 = vmul.f32 0.5, %v402
          %v404 = vsub.f32 1.5, %v403
          %v405 = vmul.f32 %v400, %v404
          %vm406 = vweird.f32 %v365
          %vm407 = vweird.f32 %v400
          %vm408 = vmor %vm406, %vm407
          %v409 = vsel %vm408, %v400, %v405
          %v410 = vrsqrt.pop %v366
          %v411 = vmul.f32 %v410, %v366
          %v412 = vmul.f32 %v411, %v410
          %v413 = vmul.f32 0.5, %v412
          %v414 = vsub.f32 1.5, %v413
          %v415 = vmul.f32 %v410, %v414
          %vm416 = vweird.f32 %v366
          %vm417 = vweird.f32 %v410
          %vm418 = vmor %vm416, %vm417
          %v419 = vsel %vm418, %v410, %v415
          %v420 = vrsqrt.pop %v367
          %v421 = vmul.f32 %v420, %v367
          %v422 = vmul.f32 %v421, %v420
          %v423 = vmul.f32 0.5, %v422
          %v424 = vsub.f32 1.5, %v423
          %v425 = vmul.f32 %v420, %v424
          %vm426 = vweird.f32 %v367
          %vm427 = vweird.f32 %v420
          %vm428 = vmor %vm426, %vm427
          %v429 = vsel %vm428, %v420, %v425
          %v430 = vrsqrt.pop %v368
          %v431 = vmul.f32 %v430, %v368
          %v432 = vmul.f32 %v431, %v430
          %v433 = vmul.f32 0.5, %v432
          %v434 = vsub.f32 1.5, %v433
          %v435 = vmul.f32 %v430, %v434
          %vm436 = vweird.f32 %v368
          %vm437 = vweird.f32 %v430
          %vm438 = vmor %vm436, %vm437
          %v439 = vsel %vm438, %v430, %v435
          %v440 = vrsqrt.pop %v369
          %v441 = vmul.f32 %v440, %v369
          %v442 = vmul.f32 %v441, %v440
          %v443 = vmul.f32 0.5, %v442
          %v444 = vsub.f32 1.5, %v443
          %v445 = vmul.f32 %v440, %v444
          %vm446 = vweird.f32 %v369
          %vm447 = vweird.f32 %v440
          %vm448 = vmor %vm446, %vm447
          %v449 = vsel %vm448, %v440, %v445
          %v450 = vmul.f32 %v330, %v379
          %v451 = vmul.f32 %v331, %v389
          %v452 = vmul.f32 %v332, %v399
          %v453 = vmul.f32 %v333, %v409
          %v454 = vmul.f32 %v334, %v419
          %v455 = vmul.f32 %v335, %v429
          %v456 = vmul.f32 %v336, %v439
          %v457 = vmul.f32 %v337, %v449
          %458 = vst [vmem:[%s221] sm:$0xff] %v450
          %459 = vst [vmem:[%s221 + $0x8] sm:$0xff] %v451
          %460 = vst [vmem:[%s221 + $0x10] sm:$0xff] %v452
          %461 = vst [vmem:[%s221 + $0x18] sm:$0xff] %v453
          %462 = vst [vmem:[%s221 + $0x20] sm:$0xff] %v454
          %463 = vst [vmem:[%s221 + $0x28] sm:$0xff] %v455
          %464 = vst [vmem:[%s221 + $0x30] sm:$0xff] %v456
          %465 = vst [vmem:[%s221 + $0x38] sm:$0xff] %v457
        $region44: #{_agg_normalize_padded_impl.1} parent=27 // pred_fallthru
          _
        %s466 = sand.u32 %s96, 1
        %s467 = scalar_lea.sflag [#allocation5], %s466
        %s468 = sand.u32 %s96, 1
        %s469 = smul.addr %s468, 64
        %s470 = scalar_lea.vmem [#allocation8], %s469
        // Predicated region
        $region45: #{_agg_normalize_padded_impl.1} parent=27 // pred_check
          %p471 = pneg %p106
        $region46: #{_agg_normalize_padded_impl.1} parent=27 // pred_check_branch
          %473 = sbr.rel (%p471) target = $region48
        $region47: #{_agg_normalize_padded_impl.1} parent=27 // pred_region
          %s474 = smul.u32 8, %s26
          %476 = vsyncadd %s467, 0
          %s477 = smul.addr %s474, 8
          %s478 = scalar_lea.hbm %s2, %s477
          %s479 = sshll.u32 %s470, 4
          %s480 = int_to_ptr.vmem [resolvable:$true] %s479
          %s481 = sshll.u32 %s478, 4
          %s482 = int_to_ptr.hbm [resolvable:$true] %s481
          %487 = dma.vmem_to_hbm [thread:$0]  %s480, 1024, %s482, %s467, 128, 128, 8
        $region48: #{_agg_normalize_padded_impl.1} parent=27 // pred_fallthru
          _
      $region28: #{_agg_normalize_padded_impl.1} parent=5 // pred_fallthru
        _
      %p488 = scmp.le.s32.totalorder 2, %s17
      // Predicated region
      $region49: #{_agg_normalize_padded_impl.1} parent=5 // pred_check
        %p489 = pneg %p488
      $region50: #{_agg_normalize_padded_impl.1} parent=5 // pred_check_branch
        %491 = sbr.rel (%p489) target = $region52
      $region51: #{_agg_normalize_padded_impl.1} parent=5 // pred_region
        %s492 = ssub.s32 %s17, 2
        // Predicated region
        $region53: #{_agg_normalize_padded_impl.1} parent=51 // pred_check
          %p493 = pneg %p112
        $region54: #{_agg_normalize_padded_impl.1} parent=51 // pred_check_branch
          %495 = sbr.rel (%p493) target = $region56
        $region55: #{_agg_normalize_padded_impl.1} parent=51 // pred_region
          %s496 = sand.u32 %s97, 1
          %s497 = scalar_lea.sflag [#allocation5], %s496
          %s498 = sand.u32 %s97, 1
          %s499 = smul.addr %s498, 64
          %s500 = scalar_lea.vmem [#allocation8], %s499
          %502 = dma.done %s497, 1024
        $region56: #{_agg_normalize_padded_impl.1} parent=51 // pred_fallthru
          _
      $region52: #{_agg_normalize_padded_impl.1} parent=5 // pred_fallthru
        _
    $region6: #{_agg_normalize_padded_impl.1} parent=1 // loop_footer
      %s21 = sadd.s32 1, %s17
    $region7: #{_agg_normalize_padded_impl.1} parent=1 // loop_footer_branch
      %16 = sbr.rel target = $region3
    $region8: #{_agg_normalize_padded_impl.1} parent=1 // loop_exit
      _
    %503 = vsyncpa [#allocation4], 1
    %s504 = scalar_lea.sflag [#allocation4], 1
    %505 = vsyncpa %s504, 1
    %506 = vsyncpa [#allocation7], 1
    %s507 = scalar_lea.sflag [#allocation7], 1
    %508 = vsyncpa %s507, 1
    %509 = vsyncpa [#allocation5], 1
    %s510 = scalar_lea.sflag [#allocation5], 1
    %511 = vsyncpa %s510, 1

</llo_original>
